<compile_context>
chip_gen: v5e
topology: v5e:2x2
jax: 0.10.0
libtpu: 0.0.40
codegen_flags: <defaults>
</compile_context>

<pallas_src>
import jax
import jax.numpy as jnp
import numpy as np
from jax.experimental import pallas as pl
from jax.experimental.pallas import tpu as pltpu

TRAINING = False          # MC dropout active only when True (eval -> identity, deterministic)
DROP_RATE = 0.1
LANE = 128


# --------------------------------- dropout -------------------------------------------
def _mc_dropout(h, rate):
    """Inverted MC dropout (PyTorch nn.Dropout semantics). Identity when not TRAINING."""
    if (not TRAINING) or rate <= 0.0:
        return h
    # TODO(synk): MC-dropout (TRAINING=True) path is not validated against a torch reference.
    bits = pltpu.bitcast(pltpu.prng_random_bits(h.shape), jnp.uint32)
    thresh = jnp.uint32(int(round(rate * (2.0 ** 32))))      # drop iff bits < thresh
    return jnp.where(bits >= thresh, h * (1.0 / (1.0 - rate)), 0.0)


# ------------------------------ fused MLP kernel --------------------------------------
def make_kernel(dims, drop_layers, drop_rate):
    """dims = ((cin, cout), ...) per layer; all weights/biases live in one packed ref."""

    def kernel(seed_ref, x_ref, p_ref, o_ref):
        if TRAINING and drop_rate > 0.0:
            pltpu.prng_seed(seed_ref[0] + pl.program_id(0))
        h = x_ref[...]                                        # (Cin, TN), lanes = positions
        for i, (cin, cout) in enumerate(dims):
            off = 256 * i                                     # two 128-lane tiles per layer
            w = p_ref[0:cout, off:off + cin]                  # (cout, cin)
            b = p_ref[0:cout, off + 128:off + 129]            # (cout, 1), 128-aligned lane
            h = jnp.maximum(jnp.dot(w, h, preferred_element_type=jnp.float32) + b, 0.0)
            if i in drop_layers:
                h = _mc_dropout(h, drop_rate)
        o_ref[...] = h.astype(o_ref.dtype)

    return kernel


# ------------------------------ parameter packing -------------------------------------
def pack_params(params):
    """Pack every conv weight/bias into one (64, 256*n_layers) f32 slab.

    Layer i occupies two 128-lane tiles: weight at lanes [256i, 256i+cin),
    bias column at lane 256i+128.  The last layer's out-channels are zero-padded
    to a multiple of 8 sublanes (ReLU(0+0)=0; sliced off in the wrapper).
    """
    we, be = params['extrafea']
    layers = [(we, be)] + [tuple(p) for p in params['process']]

    w_last, b_last = layers[-1]
    cout = int(w_last.shape[0])
    cout_pad = -(-cout // 8) * 8
    if cout_pad != cout:
        w_last = jnp.zeros((cout_pad, w_last.shape[1]), jnp.float32).at[:cout].set(w_last)
        b_last = jnp.zeros((cout_pad, 1), jnp.float32).at[:cout].set(b_last)
        layers[-1] = (w_last, b_last)

    dims = tuple((int(w.shape[1]), int(w.shape[0])) for w, _ in layers)
    assert all(ci <= 128 for ci, _ in dims), "packed layout assumes cin <= 128"
    rmax = -(-max(co for _, co in dims) // 8) * 8

    packed = jnp.zeros((rmax, 256 * len(layers)), jnp.float32)
    for i, (w, b) in enumerate(layers):
        off = 256 * i
        packed = packed.at[: w.shape[0], off: off + w.shape[1]].set(w.astype(jnp.float32))
        packed = packed.at[: b.shape[0], off + 128: off + 129].set(b.astype(jnp.float32))
    return packed, dims, cout, cout_pad


def _choose_lane_tile(L, max_tile=2048):
    """Largest lane tile <= max_tile, multiple of 128, with >=2 grid steps when possible."""
    lp = -(-L // LANE) * LANE
    if lp <= LANE:
        return LANE
    half = -(-(lp // 2) // LANE) * LANE
    return max(LANE, min(max_tile, half))


# ------------------------------- wrapper / glue ---------------------------------------
def forward(params, inputs, *, seed=0):
    x = inputs['img_block']                                   # (B, Cin, D, H, W)  NCDHW
    c0 = inputs['mask_block_coords0'][0]
    c1 = inputs['mask_block_coords1'][0]
    c2 = inputs['mask_block_coords2'][0]
    B, Cin, D, H, W = x.shape
    N = c0.shape[0]

    # FOVin=1 => the encoding conv is pointwise, so it commutes with the gather.
    # Gather the raw Cin channels at the masked coords in the wrapper (tiny XLA gather)
    # instead of DMA'ing the whole volume / building an O(P*N) one-hot in-kernel.
    flat_idx = (c0 * (H * W) + c1 * W + c2).astype(jnp.int32)
    x_g = jnp.take(x.reshape(B, Cin, D * H * W), flat_idx, axis=2)   # (B, Cin, N)

    # Fold batch into the lane axis: one lane-dense (Cin, B*N) slab, weights shared.
    L = B * N
    x_all = jnp.transpose(x_g, (1, 0, 2)).reshape(Cin, L)

    packed, dims, cout, cout_pad = pack_params(params)
    # Dropout sits on every net_process layer except the final (Conv,ReLU,Conv,ReLU) pair.
    drop_layers = frozenset(range(1, len(dims) - 2))
    kernel = make_kernel(dims, drop_layers, DROP_RATE)

    # Lane (position) tiling: bounded VMEM, double-buffered pipeline, and >=2 parallel
    # steps when there is enough work so both v7x TensorCores are busy.
    tn = _choose_lane_tile(L)
    num_tiles = -(-L // tn)
    Lp = num_tiles * tn
    if Lp != L:
        x_all = jnp.pad(x_all, ((0, 0), (0, Lp - L)))

    out = pl.pallas_call(
        kernel,
        out_shape=jax.ShapeDtypeStruct((cout_pad, Lp), jnp.float32),
        grid_spec=pltpu.PrefetchScalarGridSpec(
            num_scalar_prefetch=1,                            # dropout seed -> SMEM
            grid=(num_tiles,),
            in_specs=[
                pl.BlockSpec((Cin, tn), lambda t, s: (0, t)),         # activations tile
                pl.BlockSpec(packed.shape, lambda t, s: (0, 0)),      # packed params, resident
            ],
            out_specs=pl.BlockSpec((cout_pad, tn), lambda t, s: (0, t)),
        ),
        compiler_params=pltpu.CompilerParams(dimension_semantics=("parallel",)),
    )(jnp.asarray([seed], jnp.int32), x_all, packed)

    # (cout_pad, Lp) -> slice channel/lane padding, un-fold batch -> (B, Cout, N).
    return out[:cout, :L].reshape(cout, B, N).transpose(1, 0, 2)


# ------------------------------- pure-JAX reference -----------------------------------
def forward_ref(params, inputs):
    x = inputs['img_block']
    c0 = inputs['mask_block_coords0'][0]
    c1 = inputs['mask_block_coords1'][0]
    c2 = inputs['mask_block_coords2'][0]
    xp = jnp.transpose(x, (0, 2, 3, 4, 1))                    # (B, D, H, W, Cin)
    we, be = params['extrafea']                               # (Cenc, Cin), (Cenc, 1)
    f = jnp.maximum(xp @ we.T + be[:, 0], 0.0)
    h = f[:, c0, c1, c2, :]                                   # (B, N, Cenc)
    for (w, b) in params['process']:
        h = jnp.maximum(h @ w.T + b[:, 0], 0.0)
    return jnp.transpose(h, (0, 2, 1))                        # (B, Cout, N)


def conv_params(key, cin, cout):
    """Deterministic kaiming-normal weight, channels-major (cout, cin)."""
    kw, kb = jax.random.split(key)
    w = jax.random.normal(kw, (cout, cin), jnp.float32) * np.sqrt(2.0 / cin)
    bound = 1.0 / np.sqrt(cin)
    b = jax.random.uniform(kb, (cout, 1), jnp.float32, minval=-bound, maxval=bound)
    return w, b


if __name__ == "__main__":
    B, Cin, D, H, W = 2, 4, 8, 8, 8
    Cenc, Hid, Cout, N = 16, 32, 2, 200      # N not a multiple of 128: exercises padding/tiling

    key = jax.random.PRNGKey(0)
    keys = jax.random.split(key, 10)
    params = {
        'extrafea': conv_params(keys[0], Cin, Cenc),
        'process': (
            conv_params(keys[1], Cenc, Hid),
            conv_params(keys[2], Hid, Hid),
            conv_params(keys[3], Hid, 64),
            conv_params(keys[4], 64, Cout),
        ),
    }

    x = jax.random.normal(keys[5], (B, Cin, D, H, W), jnp.float32)
    inputs = {
        'img_block': x,
        'mask_block_coords0': jax.random.randint(keys[6], (1, N), 0, D),
        'mask_block_coords1': jax.random.randint(keys[7], (1, N), 0, H),
        'mask_block_coords2': jax.random.randint(keys[8], (1, N), 0, W),
    }

    out = jax.block_until_ready(forward(params, inputs))
    assert out.shape == (B, Cout, N), out.shape

    ref = forward_ref(params, inputs)
    np.testing.assert_allclose(np.asarray(out), np.asarray(ref), rtol=1e-4, atol=1e-4)
    print("KERNEL_OK")
</pallas_src>

<mosaic_0001>
module attributes {stable_mosaic.version = 11 : i64} {
  func.func @kernel(%arg0: i32, %arg1: memref<1xi32, #tpu.memory_space<smem>>, %arg2: memref<4x256xf32, #tpu.memory_space<vmem>>, %arg3: memref<64x1280xf32, #tpu.memory_space<vmem>>, %arg4: memref<8x256xf32, #tpu.memory_space<vmem>>) attributes {dimension_semantics = [#tpu.dimension_semantics<parallel>], iteration_bounds = array<i64: 2>, scalar_prefetch = 1 : i64, scratch_operands = 0 : i64, tpu.core_type = #tpu.core_type<tc>, window_params = [{transform_indices = @transform_0, window_bounds = array<i64: 4, 256>}, {pipeline_mode = #tpu.pipeline_mode<synchronous>, transform_indices = @transform_1, window_bounds = array<i64: 64, 1280>}, {transform_indices = @transform_2, window_bounds = array<i64: 8, 256>}]} {
    %c0 = arith.constant 0 : index
    %c0_0 = arith.constant 0 : index
    %0 = vector.load %arg2[%c0, %c0_0] : memref<4x256xf32, #tpu.memory_space<vmem>>, vector<4x256xf32>
    %c0_1 = arith.constant 0 : index
    %c0_2 = arith.constant 0 : index
    %1 = vector.load %arg3[%c0_1, %c0_2] : memref<64x1280xf32, #tpu.memory_space<vmem>>, vector<16x4xf32>
    %c0_3 = arith.constant 0 : index
    %c128 = arith.constant 128 : index
    %2 = vector.load %arg3[%c0_3, %c128] : memref<64x1280xf32, #tpu.memory_space<vmem>>, vector<16x1xf32>
    %cst = arith.constant dense<0.000000e+00> : vector<16x256xf32>
    %3 = tpu.matmul %1, %0, %cst {dimension_numbers = #tpu.dot_dimension_numbers<[1], [0], [0], [1], [0, 0, 1, 1], [], []>} : vector<16x4xf32>, vector<4x256xf32>, vector<16x256xf32> -> vector<16x256xf32>
    %4 = vector.broadcast %2 : vector<16x1xf32> to vector<16x256xf32>
    %5 = arith.addf %3, %4 : vector<16x256xf32>
    %cst_4 = arith.constant 0.000000e+00 : f32
    %6 = vector.broadcast %cst_4 : f32 to vector<16x256xf32>
    %7 = arith.maximumf %5, %6 : vector<16x256xf32>
    %c0_5 = arith.constant 0 : index
    %c256 = arith.constant 256 : index
    %8 = vector.load %arg3[%c0_5, %c256] : memref<64x1280xf32, #tpu.memory_space<vmem>>, vector<32x16xf32>
    %c0_6 = arith.constant 0 : index
    %c384 = arith.constant 384 : index
    %9 = vector.load %arg3[%c0_6, %c384] : memref<64x1280xf32, #tpu.memory_space<vmem>>, vector<32x1xf32>
    %cst_7 = arith.constant dense<0.000000e+00> : vector<32x256xf32>
    %10 = tpu.matmul %8, %7, %cst_7 {dimension_numbers = #tpu.dot_dimension_numbers<[1], [0], [0], [1], [0, 0, 1, 1], [], []>} : vector<32x16xf32>, vector<16x256xf32>, vector<32x256xf32> -> vector<32x256xf32>
    %11 = vector.broadcast %9 : vector<32x1xf32> to vector<32x256xf32>
    %12 = arith.addf %10, %11 : vector<32x256xf32>
    %cst_8 = arith.constant 0.000000e+00 : f32
    %13 = vector.broadcast %cst_8 : f32 to vector<32x256xf32>
    %14 = arith.maximumf %12, %13 : vector<32x256xf32>
    %c0_9 = arith.constant 0 : index
    %c512 = arith.constant 512 : index
    %15 = vector.load %arg3[%c0_9, %c512] : memref<64x1280xf32, #tpu.memory_space<vmem>>, vector<32x32xf32>
    %c0_10 = arith.constant 0 : index
    %c640 = arith.constant 640 : index
    %16 = vector.load %arg3[%c0_10, %c640] : memref<64x1280xf32, #tpu.memory_space<vmem>>, vector<32x1xf32>
    %cst_11 = arith.constant dense<0.000000e+00> : vector<32x256xf32>
    %17 = tpu.matmul %15, %14, %cst_11 {dimension_numbers = #tpu.dot_dimension_numbers<[1], [0], [0], [1], [0, 0, 1, 1], [], []>} : vector<32x32xf32>, vector<32x256xf32>, vector<32x256xf32> -> vector<32x256xf32>
    %18 = vector.broadcast %16 : vector<32x1xf32> to vector<32x256xf32>
    %19 = arith.addf %17, %18 : vector<32x256xf32>
    %cst_12 = arith.constant 0.000000e+00 : f32
    %20 = vector.broadcast %cst_12 : f32 to vector<32x256xf32>
    %21 = arith.maximumf %19, %20 : vector<32x256xf32>
    %c0_13 = arith.constant 0 : index
    %c768 = arith.constant 768 : index
    %22 = vector.load %arg3[%c0_13, %c768] : memref<64x1280xf32, #tpu.memory_space<vmem>>, vector<64x32xf32>
    %c0_14 = arith.constant 0 : index
    %c896 = arith.constant 896 : index
    %23 = vector.load %arg3[%c0_14, %c896] : memref<64x1280xf32, #tpu.memory_space<vmem>>, vector<64x1xf32>
    %cst_15 = arith.constant dense<0.000000e+00> : vector<64x256xf32>
    %24 = tpu.matmul %22, %21, %cst_15 {dimension_numbers = #tpu.dot_dimension_numbers<[1], [0], [0], [1], [0, 0, 1, 1], [], []>} : vector<64x32xf32>, vector<32x256xf32>, vector<64x256xf32> -> vector<64x256xf32>
    %25 = vector.broadcast %23 : vector<64x1xf32> to vector<64x256xf32>
    %26 = arith.addf %24, %25 : vector<64x256xf32>
    %cst_16 = arith.constant 0.000000e+00 : f32
    %27 = vector.broadcast %cst_16 : f32 to vector<64x256xf32>
    %28 = arith.maximumf %26, %27 : vector<64x256xf32>
    %c0_17 = arith.constant 0 : index
    %c1024 = arith.constant 1024 : index
    %29 = vector.load %arg3[%c0_17, %c1024] : memref<64x1280xf32, #tpu.memory_space<vmem>>, vector<8x64xf32>
    %c0_18 = arith.constant 0 : index
    %c1152 = arith.constant 1152 : index
    %30 = vector.load %arg3[%c0_18, %c1152] : memref<64x1280xf32, #tpu.memory_space<vmem>>, vector<8x1xf32>
    %cst_19 = arith.constant dense<0.000000e+00> : vector<8x256xf32>
    %31 = tpu.matmul %29, %28, %cst_19 {dimension_numbers = #tpu.dot_dimension_numbers<[1], [0], [0], [1], [0, 0, 1, 1], [], []>} : vector<8x64xf32>, vector<64x256xf32>, vector<8x256xf32> -> vector<8x256xf32>
    %32 = vector.broadcast %30 : vector<8x1xf32> to vector<8x256xf32>
    %33 = arith.addf %31, %32 : vector<8x256xf32>
    %cst_20 = arith.constant 0.000000e+00 : f32
    %34 = vector.broadcast %cst_20 : f32 to vector<8x256xf32>
    %35 = arith.maximumf %33, %34 : vector<8x256xf32>
    %c0_21 = arith.constant 0 : index
    %c0_22 = arith.constant 0 : index
    %36 = vector.load %arg4[%c0_21, %c0_22] : memref<8x256xf32, #tpu.memory_space<vmem>>, vector<8x256xf32>
    tpu.vector_store %arg4[%c0_21, %c0_22], %35 {strides = array<i32>} : memref<8x256xf32, #tpu.memory_space<vmem>>, vector<8x256xf32>,
    return
  }
  func.func @transform_0(%arg0: i32, %arg1: memref<1xi32, #tpu.memory_space<smem>>) -> (i32, i32) {
    %c0_i32 = arith.constant 0 : i32
    %c0_i32_0 = arith.constant 0 : i32
    return %c0_i32, %arg0 : i32, i32
  }
  func.func @transform_1(%arg0: i32, %arg1: memref<1xi32, #tpu.memory_space<smem>>) -> (i32, i32) {
    %c0_i32 = arith.constant 0 : i32
    %c0_i32_0 = arith.constant 0 : i32
    %c0_i32_1 = arith.constant 0 : i32
    return %c0_i32, %c0_i32_0 : i32, i32
  }
  func.func @transform_2(%arg0: i32, %arg1: memref<1xi32, #tpu.memory_space<smem>>) -> (i32, i32) {
    %c0_i32 = arith.constant 0 : i32
    %c0_i32_0 = arith.constant 0 : i32
    return %c0_i32, %arg0 : i32, i32
  }
}

</mosaic_0001>

<llo_original>
// kernel: tpu_custom_call.1
$region0: #{tpu_custom_call.1}
  #allocation0 [shape = 'u32[]', space=smem, size = 0x4, offset = 0x4, fixed_abs, tag = 'smem constant byte address 0x4 - core index']
  #allocation1 [shape = 'u32[72,128]{1,0:T(1,128)}', space=vmem, size = 0x9000, scoped, tag = 'internal scratch']
  #allocation2 [shape = 's32[1]{0}', space=sflag, size = 0x4, scoped, tag = 'scoped memory for tpu_custom_call.1']
  #allocation3 [shape = 's32[1]{0:T(128)S(6)}', space=smem, size = 0x200, scoped, tag = 'prefetched SMEM operand 0']
  %s0 = inlined_call_operand.<no memory space> [shape: s32[1], index: 0, kind: input, shape index: {}]
  %s1 = inlined_call_operand.hbm [shape: f32[4,512], index: 1, kind: input, shape index: {}]
  %s2 = inlined_call_operand.hbm [shape: f32[64,1280], index: 2, kind: input, shape index: {}]
  %s3 = inlined_call_operand.hbm [shape: f32[8,512], index: 3, kind: output, shape index: {}]
  %s4 = sld [smem:[#allocation0]]
  $region49: #{tpu_custom_call.1} parent=0
    _
  %s6 = ssub.s32 1, %s4
  %s7 = scalar_select 0, %s6, %s4
  %8 = sst [smem:[#allocation3]] %s0
  $region1: #{tpu_custom_call.1} parent=0
    #allocation4 [shape = 'u8[8192]{0}', space=vmem, size = 0x2000, scoped, tag = 'input window, operand 1']
    #allocation5 [shape = 's32[2]{0}', space=sflag, size = 0x8, scoped, tag = 'scoped memory for tpu_custom_call.1']
    #allocation6 [shape = 's32[2]{0}', space=sflag, size = 0x8, scoped, tag = 'scoped memory for tpu_custom_call.1']
    #allocation7 [shape = 'u8[327680]{0}', space=vmem, size = 0x50000, scoped, tag = 'input window, operand 2, single buffered']
    #allocation8 [shape = 's32[1]{0}', space=sflag, size = 0x4, scoped, tag = 'scoped memory for tpu_custom_call.1']
    #allocation9 [shape = 'u8[16384]{0}', space=vmem, size = 0x4000, scoped, tag = 'output window, operand 0']
    %9 = vsyncpa [#allocation5], 0
    %s10 = scalar_lea.sflag [#allocation5], 1
    %11 = vsyncpa %s10, 0
    %12 = vsyncpa [#allocation8], 0
    %13 = vsyncpa [#allocation6], 0
    %s14 = scalar_lea.sflag [#allocation6], 1
    %15 = vsyncpa %s14, 0
    loop: start=0, step=1, limit=4
    $region2: #{tpu_custom_call.1} parent=1 // loop_pre_header
      _
    $region3: #{tpu_custom_call.1} parent=1 // loop_header
      %s17 = sphi 0, %s21
      %p18 = scmp.ge.s32.totalorder %s17, 4
      %s27 = sphi 0, %s29
      %s30 = sphi 0, %s27
      %s31 = sphi 0, %s30
      %s47 = sphi 0, %s31
      %s51 = sphi 0, %s51
      %s53 = sphi 0, %s51
      %s54 = sphi 0, %s53
      %s68 = sphi 0, %s54
      %s74 = sphi 0, %s76
      %s77 = sphi 0, %s74
      %s78 = sphi 0, %s77
      %s94 = sphi 0, %s78
    $region4: #{tpu_custom_call.1} parent=1 // loop_header_branch
      %20 = sbr.rel (%p18) target = $region8
    $region5: #{tpu_custom_call.1} parent=1 // loop_body
      %s22 = ssub.s32 %s17, 1
      %s23 = ssub.s32 %s17, 2
      %s24 = sadd.s32 %s17, 1
      %s25 = ssub.s32 %s17, %s24
      %p26 = scmp.eq.s32.totalorder %s25, 0
      %s28 = sadd.s32 %s27, 1
      %s29 = scalar_select %p26, %s27, %s28
      %p32 = pneg %p26
      %p33 = scmp.eq.s32.totalorder %s17, 1
      %p34 = por %p32, %p33
      %p35 = scmp.ne.s32.totalorder %s27, %s30
      %p36 = scmp.eq.s32.totalorder %s17, 0
      %p37 = por %p35, %p36
      %p38 = scmp.ne.s32.totalorder %s27, %s30
      %p39 = scmp.eq.s32.totalorder %s22, 1
      %p40 = por %p38, %p39
      %p41 = scmp.ne.s32.totalorder %s30, %s31
      %p42 = scmp.eq.s32.totalorder %s22, 0
      %p43 = por %p41, %p42
      %p44 = scmp.ne.s32.totalorder %s30, %s31
      %p45 = scmp.eq.s32.totalorder %s23, 1
      %p46 = por %p44, %p45
      %p48 = scmp.ne.s32.totalorder %s31, %s47
      %p49 = scmp.eq.s32.totalorder %s23, 0
      %p50 = por %p48, %p49
      %s52 = sadd.s32 %s51, 1
      %p55 = scmp.eq.s32.totalorder %s17, 1
      %p56 = scmp.ne.s32.totalorder %s51, %s53
      %p57 = scmp.eq.s32.totalorder %s17, 0
      %p58 = por %p56, %p57
      %p59 = scmp.ne.s32.totalorder %s51, %s53
      %p60 = scmp.eq.s32.totalorder %s22, 1
      %p61 = por %p59, %p60
      %p62 = scmp.ne.s32.totalorder %s53, %s54
      %p63 = scmp.eq.s32.totalorder %s22, 0
      %p64 = por %p62, %p63
      %p65 = scmp.ne.s32.totalorder %s53, %s54
      %p66 = scmp.eq.s32.totalorder %s23, 1
      %p67 = por %p65, %p66
      %p69 = scmp.ne.s32.totalorder %s54, %s68
      %p70 = scmp.eq.s32.totalorder %s23, 0
      %p71 = por %p69, %p70
      %s72 = ssub.s32 %s17, %s24
      %p73 = scmp.eq.s32.totalorder %s72, 0
      %s75 = sadd.s32 %s74, 1
      %s76 = scalar_select %p73, %s74, %s75
      %p79 = pneg %p73
      %p80 = scmp.eq.s32.totalorder %s17, 1
      %p81 = por %p79, %p80
      %p82 = scmp.ne.s32.totalorder %s74, %s77
      %p83 = scmp.eq.s32.totalorder %s17, 0
      %p84 = por %p82, %p83
      %p85 = scmp.ne.s32.totalorder %s74, %s77
      %p86 = scmp.eq.s32.totalorder %s22, 1
      %p87 = por %p85, %p86
      %p88 = scmp.ne.s32.totalorder %s77, %s78
      %p89 = scmp.eq.s32.totalorder %s22, 0
      %p90 = por %p88, %p89
      %p91 = scmp.ne.s32.totalorder %s77, %s78
      %p92 = scmp.eq.s32.totalorder %s23, 1
      %p93 = por %p91, %p92
      %p95 = scmp.ne.s32.totalorder %s78, %s94
      %p96 = scmp.eq.s32.totalorder %s23, 0
      %p97 = por %p95, %p96
      %p98 = scmp.le.s32.totalorder 1, %s17
      %p99 = scmp.lt.s32.totalorder %s17, 3
      %p100 = pnand %p98, %p99
      %p101 = pneg %p100
      // Predicated region
      $region9: #{tpu_custom_call.1} parent=5 // pred_check
        _
      $region10: #{tpu_custom_call.1} parent=5 // pred_check_branch
        %103 = sbr.rel (%p100) target = $region12
      $region11: #{tpu_custom_call.1} parent=5 // pred_region
        %s104 = ssub.s32 %s17, 1
        // Predicated region
        $region13: #{tpu_custom_call.1} parent=11 // pred_check
          %p105 = pneg %p64
        $region14: #{tpu_custom_call.1} parent=11 // pred_check_branch
          %107 = sbr.rel (%p105) target = $region16
        $region15: #{tpu_custom_call.1} parent=11 // pred_region
          %109 = vsyncadd [#allocation8], 0
          %s110 = sshll.u32 %s2, 4
          %s111 = int_to_ptr.hbm [resolvable:$true] %s110
          %s112 = sshll.u32 [#allocation7], 4
          %s113 = int_to_ptr.vmem [resolvable:$true] %s112
          %118 = dma.hbm_to_vmem [thread:$0]  %s111, 10240, %s113, [#allocation8], 1280, 1280, 80
        $region16: #{tpu_custom_call.1} parent=11 // pred_fallthru
          _
      $region12: #{tpu_custom_call.1} parent=5 // pred_fallthru
        _
      %p119 = scmp.lt.s32.totalorder %s17, 2
      // Predicated region
      $region17: #{tpu_custom_call.1} parent=5 // pred_check
        %p120 = pneg %p119
      $region18: #{tpu_custom_call.1} parent=5 // pred_check_branch
        %122 = sbr.rel (%p120) target = $region20
      $region19: #{tpu_custom_call.1} parent=5 // pred_region
        // Predicated region
        $region21: #{tpu_custom_call.1} parent=19 // pred_check
          %p123 = pneg %p37
        $region22: #{tpu_custom_call.1} parent=19 // pred_check_branch
          %125 = sbr.rel (%p123) target = $region24
        $region23: #{tpu_custom_call.1} parent=19 // pred_region
          %s126 = sand.u32 %s27, 1
          %s127 = scalar_lea.sflag [#allocation5], %s126
          %s128 = sand.u32 %s27, 1
          %s129 = smul.addr %s128, 8
          %s130 = scalar_lea.vmem [#allocation4], %s129
          %s131 = smul.u32 2, %s17
          %133 = vsyncadd %s127, 0
          %s134 = smul.addr %s131, 4
          %s135 = scalar_lea.hbm %s1, %s134
          %s137 = sshll.u32 %s135, 4
          %s138 = int_to_ptr.hbm [resolvable:$true] %s137
          %s139 = sshll.u32 %s130, 4
          %s140 = int_to_ptr.vmem [resolvable:$true] %s139
          %142 = dma.hbm_to_vmem [thread:$0]  %s138, 128, %s140, %s127
        $region24: #{tpu_custom_call.1} parent=19 // pred_fallthru
          _
      $region20: #{tpu_custom_call.1} parent=5 // pred_fallthru
        _
      %p143 = scmp.le.s32.totalorder 1, %s17
      %p144 = scmp.lt.s32.totalorder %s17, 3
      %p145 = pnand %p143, %p144
      %p146 = pneg %p145
      // Predicated region
      $region25: #{tpu_custom_call.1} parent=5 // pred_check
        _
      $region26: #{tpu_custom_call.1} parent=5 // pred_check_branch
        %148 = sbr.rel (%p145) target = $region28
      $region27: #{tpu_custom_call.1} parent=5 // pred_region
        %s149 = ssub.s32 %s17, 1
        %s150 = sand.u32 %s30, 1
        %s151 = scalar_lea.sflag [#allocation5], %s150
        %s152 = sand.u32 %s30, 1
        %s153 = smul.addr %s152, 8
        %s154 = scalar_lea.vmem [#allocation4], %s153
        // Predicated region
        $region29: #{tpu_custom_call.1} parent=27 // pred_check
          %p155 = pneg %p43
        $region30: #{tpu_custom_call.1} parent=27 // pred_check_branch
          %157 = sbr.rel (%p155) target = $region32
        $region31: #{tpu_custom_call.1} parent=27 // pred_region
          %159 = dma.done %s151, 128
        $region32: #{tpu_custom_call.1} parent=27 // pred_fallthru
          _
        // Predicated region
        $region33: #{tpu_custom_call.1} parent=27 // pred_check
          %p160 = pneg %p64
        $region34: #{tpu_custom_call.1} parent=27 // pred_check_branch
          %162 = sbr.rel (%p160) target = $region36
        $region35: #{tpu_custom_call.1} parent=27 // pred_region
          %164 = dma.done [#allocation8], 10240
        $region36: #{tpu_custom_call.1} parent=27 // pred_fallthru
          _
        %s165 = sand.u32 %s30, 1
        %s166 = scalar_lea.sflag [#allocation5], %s165
        %s167 = sand.u32 %s30, 1
        %s168 = smul.addr %s167, 8
        %s169 = scalar_lea.vmem [#allocation4], %s168
        %p170 = pneg %p43
        %p171 = pneg %p40
        %p172 = pneg %p64
        %p173 = pneg %p61
        %p174 = pneg %p90
        %p175 = pneg %p87
        %s176 = sand.u32 %s77, 1
        %s177 = scalar_lea.sflag [#allocation6], %s176
        %s178 = sand.u32 %s77, 1
        %s179 = smul.addr %s178, 16
        %s180 = scalar_lea.vmem [#allocation9], %s179
        %s181 = smul.u32 2, %s22
        %s182 = smul.u32 2, %s22
        %v183 = vld [vmem:[%s154] sm:$0xff]
        %v184 = vld [vmem:[#allocation7] sm:$0xff]
        %v185 = vld [vmem:[#allocation7 + $0x50] sm:$0xff]
        %v186 = vld [vmem:[#allocation7 + $0x8] sm:$0xff]
        %v187 = vld [vmem:[#allocation7 + $0x58] sm:$0xff]
        %189 = vset.pattern.permute.xlu0 0
        %190 = vperm.xlu0 %189, %v186
        %v191 = vpop.permute.xlu0 %190
        %194 = vset.pattern.permute.xlu0 0
        %195 = vperm.xlu0 %194, %v187
        %v196 = vpop.permute.xlu0 %195
        %199 = vst [vmem:[#allocation1] ss:$2 sm:$0xff] %v183
        %v200 = vld.sshfl [vmem:[#allocation1] sm:$0xff pattern:$0x75316420]
        %v201 = vld.sshfl [vmem:[#allocation1 + $0x8] sm:$0xff pattern:$0x75316420]
        %vm202 = vcmask 31744
        %v204 = vsel %vm202, %v184, 0
        %v207 = vsel %vm202, %v185, 0
        %vm209 = vcmask 1043456
        %v210 = vsel %vm209, %v200, 0
        %v212 = vsel %vm209, %v201, 0
        %214 = vmatpush.msra.mxu0 0.0
        %215 = vmatpush.msra.mxu0 0.0
        %216 = vmatpush.msra.mxu0 0.0
        %217 = vmatpush.msra.mxu0 0.0
        %218 = vmatpush.msra.mxu0 0.0
        %219 = vmatpush.msra.mxu0 0.0
        %220 = vmatpush.msra.mxu0 0.0
        %221 = vmatpush.msra.mxu0 0.0
        %222 = vmatpush.msra.mxu0 0.0
        %223 = vmatpush.msra.mxu0 0.0
        %224 = vmatpush.msra.mxu0 0.0
        %225 = vmatpush.msra.mxu0 0.0
        %226 = vmatpush.msra.mxu0 0.0
        %227 = vmatpush.msra.mxu0 0.0
        %228 = vmatpush.msra.mxu0 0.0
        %229 = vmatpush.msra.mxu0 %v210
        %230 = vmatmul.f32.gmra.mxu0 %v204
        %v231 = vpop.f32.mrf.mxu0
        %v232 = vadd.f32 %v191, %v231
        %233 = vmatmul.f32.gmra.mxu0 %v207
        %v234 = vpop.f32.mrf.mxu0
        %v235 = vadd.f32 %v196, %v234
        %236 = vdwg.mxu0
        %237 = vmatpush.msra.mxu0 0.0
        %238 = vmatpush.msra.mxu0 0.0
        %239 = vmatpush.msra.mxu0 0.0
        %240 = vmatpush.msra.mxu0 0.0
        %241 = vmatpush.msra.mxu0 0.0
        %242 = vmatpush.msra.mxu0 0.0
        %243 = vmatpush.msra.mxu0 0.0
        %244 = vmatpush.msra.mxu0 0.0
        %245 = vmatpush.msra.mxu0 0.0
        %246 = vmatpush.msra.mxu0 0.0
        %247 = vmatpush.msra.mxu0 0.0
        %248 = vmatpush.msra.mxu0 0.0
        %249 = vmatpush.msra.mxu0 0.0
        %250 = vmatpush.msra.mxu0 0.0
        %251 = vmatpush.msra.mxu0 0.0
        %252 = vmatpush.msra.mxu0 %v212
        %253 = vmatmul.f32.gmra.mxu0 %v204
        %v254 = vpop.f32.mrf.mxu0
        %v255 = vadd.f32 %v191, %v254
        %256 = vmatmul.f32.gmra.mxu0 %v207
        %v257 = vpop.f32.mrf.mxu0
        %v258 = vadd.f32 %v196, %v257
        %259 = vdwg.mxu0
        %v260 = vmax.f32 %v232, 0.0
        %v261 = vmax.f32 %v255, 0.0
        %v262 = vmax.f32 %v235, 0.0
        %v263 = vmax.f32 %v258, 0.0
        %v264 = vld [vmem:[#allocation7 + $0x10] sm:$0xff]
        %v265 = vld [vmem:[#allocation7 + $0x60] sm:$0xff]
        %v266 = vld [vmem:[#allocation7 + $0xb0] sm:$0xff]
        %v267 = vld [vmem:[#allocation7 + $0x100] sm:$0xff]
        %v268 = vld [vmem:[#allocation7 + $0x18] sm:$0xff]
        %v269 = vld [vmem:[#allocation7 + $0x68] sm:$0xff]
        %v270 = vld [vmem:[#allocation7 + $0xb8] sm:$0xff]
        %v271 = vld [vmem:[#allocation7 + $0x108] sm:$0xff]
        %273 = vset.pattern.permute.xlu0 0
        %274 = vperm.xlu0 %273, %v268
        %v275 = vpop.permute.xlu0 %274
        %278 = vset.pattern.permute.xlu0 0
        %279 = vperm.xlu0 %278, %v269
        %v280 = vpop.permute.xlu0 %279
        %283 = vset.pattern.permute.xlu0 0
        %284 = vperm.xlu0 %283, %v270
        %v285 = vpop.permute.xlu0 %284
        %288 = vset.pattern.permute.xlu0 0
        %289 = vperm.xlu0 %288, %v271
        %v290 = vpop.permute.xlu0 %289
        %vm292 = vcmask 130048
        %v294 = vsel %vm292, %v264, 0
        %v297 = vsel %vm292, %v265, 0
        %v300 = vsel %vm292, %v266, 0
        %v303 = vsel %vm292, %v267, 0
        %305 = vmatpush.msra.mxu0 0.0
        %306 = vmatpush.msra.mxu0 0.0
        %307 = vmatpush.msra.mxu0 0.0
        %308 = vmatpush.msra.mxu0 0.0
        %309 = vmatpush.msra.mxu0 0.0
        %310 = vmatpush.msra.mxu0 0.0
        %311 = vmatpush.msra.mxu0 0.0
        %312 = vmatpush.msra.mxu0 0.0
        %313 = vmatpush.msra.mxu0 0.0
        %314 = vmatpush.msra.mxu0 0.0
        %315 = vmatpush.msra.mxu0 0.0
        %316 = vmatpush.msra.mxu0 0.0
        %317 = vmatpush.msra.mxu0 0.0
        %318 = vmatpush.msra.mxu0 0.0
        %319 = vmatpush.msra.mxu0 %v262
        %320 = vmatpush.msra.mxu0 %v260
        %321 = vmatmul.f32.gmra.mxu0 %v294
        %v322 = vpop.f32.mrf.mxu0
        %v323 = vadd.f32 %v275, %v322
        %324 = vmatmul.f32.gmra.mxu0 %v297
        %v325 = vpop.f32.mrf.mxu0
        %v326 = vadd.f32 %v280, %v325
        %327 = vmatmul.f32.gmra.mxu0 %v300
        %v328 = vpop.f32.mrf.mxu0
        %v329 = vadd.f32 %v285, %v328
        %330 = vmatmul.f32.gmra.mxu0 %v303
        %v331 = vpop.f32.mrf.mxu0
        %v332 = vadd.f32 %v290, %v331
        %333 = vdwg.mxu0
        %334 = vmatpush.msra.mxu0 0.0
        %335 = vmatpush.msra.mxu0 0.0
        %336 = vmatpush.msra.mxu0 0.0
        %337 = vmatpush.msra.mxu0 0.0
        %338 = vmatpush.msra.mxu0 0.0
        %339 = vmatpush.msra.mxu0 0.0
        %340 = vmatpush.msra.mxu0 0.0
        %341 = vmatpush.msra.mxu0 0.0
        %342 = vmatpush.msra.mxu0 0.0
        %343 = vmatpush.msra.mxu0 0.0
        %344 = vmatpush.msra.mxu0 0.0
        %345 = vmatpush.msra.mxu0 0.0
        %346 = vmatpush.msra.mxu0 0.0
        %347 = vmatpush.msra.mxu0 0.0
        %348 = vmatpush.msra.mxu0 %v263
        %349 = vmatpush.msra.mxu0 %v261
        %350 = vmatmul.f32.gmra.mxu0 %v294
        %v351 = vpop.f32.mrf.mxu0
        %v352 = vadd.f32 %v275, %v351
        %353 = vmatmul.f32.gmra.mxu0 %v297
        %v354 = vpop.f32.mrf.mxu0
        %v355 = vadd.f32 %v280, %v354
        %356 = vmatmul.f32.gmra.mxu0 %v300
        %v357 = vpop.f32.mrf.mxu0
        %v358 = vadd.f32 %v285, %v357
        %359 = vmatmul.f32.gmra.mxu0 %v303
        %v360 = vpop.f32.mrf.mxu0
        %v361 = vadd.f32 %v290, %v360
        %362 = vdwg.mxu0
        %v363 = vmax.f32 %v323, 0.0
        %v364 = vmax.f32 %v352, 0.0
        %v365 = vmax.f32 %v326, 0.0
        %v366 = vmax.f32 %v355, 0.0
        %v367 = vmax.f32 %v329, 0.0
        %v368 = vmax.f32 %v358, 0.0
        %v369 = vmax.f32 %v332, 0.0
        %v370 = vmax.f32 %v361, 0.0
        %v371 = vld [vmem:[#allocation7 + $0x20] sm:$0xff]
        %v372 = vld [vmem:[#allocation7 + $0x70] sm:$0xff]
        %v373 = vld [vmem:[#allocation7 + $0xc0] sm:$0xff]
        %v374 = vld [vmem:[#allocation7 + $0x110] sm:$0xff]
        %v375 = vld [vmem:[#allocation7 + $0x28] sm:$0xff]
        %v376 = vld [vmem:[#allocation7 + $0x78] sm:$0xff]
        %v377 = vld [vmem:[#allocation7 + $0xc8] sm:$0xff]
        %v378 = vld [vmem:[#allocation7 + $0x118] sm:$0xff]
        %380 = vset.pattern.permute.xlu0 0
        %381 = vperm.xlu0 %380, %v375
        %v382 = vpop.permute.xlu0 %381
        %385 = vset.pattern.permute.xlu0 0
        %386 = vperm.xlu0 %385, %v376
        %v387 = vpop.permute.xlu0 %386
        %390 = vset.pattern.permute.xlu0 0
        %391 = vperm.xlu0 %390, %v377
        %v392 = vpop.permute.xlu0 %391
        %395 = vset.pattern.permute.xlu0 0
        %396 = vperm.xlu0 %395, %v378
        %v397 = vpop.permute.xlu0 %396
        %vm399 = vcmask 261120
        %v401 = vsel %vm399, %v371, 0
        %v404 = vsel %vm399, %v372, 0
        %v407 = vsel %vm399, %v373, 0
        %v410 = vsel %vm399, %v374, 0
        %412 = vmatpush.msra.mxu0 0.0
        %413 = vmatpush.msra.mxu0 0.0
        %414 = vmatpush.msra.mxu0 0.0
        %415 = vmatpush.msra.mxu0 0.0
        %416 = vmatpush.msra.mxu0 0.0
        %417 = vmatpush.msra.mxu0 0.0
        %418 = vmatpush.msra.mxu0 0.0
        %419 = vmatpush.msra.mxu0 0.0
        %420 = vmatpush.msra.mxu0 0.0
        %421 = vmatpush.msra.mxu0 0.0
        %422 = vmatpush.msra.mxu0 0.0
        %423 = vmatpush.msra.mxu0 0.0
        %424 = vmatpush.msra.mxu0 %v369
        %425 = vmatpush.msra.mxu0 %v367
        %426 = vmatpush.msra.mxu0 %v365
        %427 = vmatpush.msra.mxu0 %v363
        %428 = vmatmul.f32.gmra.mxu0 %v401
        %v429 = vpop.f32.mrf.mxu0
        %v430 = vadd.f32 %v382, %v429
        %431 = vmatmul.f32.gmra.mxu0 %v404
        %v432 = vpop.f32.mrf.mxu0
        %v433 = vadd.f32 %v387, %v432
        %434 = vmatmul.f32.gmra.mxu0 %v407
        %v435 = vpop.f32.mrf.mxu0
        %v436 = vadd.f32 %v392, %v435
        %437 = vmatmul.f32.gmra.mxu0 %v410
        %v438 = vpop.f32.mrf.mxu0
        %v439 = vadd.f32 %v397, %v438
        %440 = vdwg.mxu0
        %441 = vmatpush.msra.mxu0 0.0
        %442 = vmatpush.msra.mxu0 0.0
        %443 = vmatpush.msra.mxu0 0.0
        %444 = vmatpush.msra.mxu0 0.0
        %445 = vmatpush.msra.mxu0 0.0
        %446 = vmatpush.msra.mxu0 0.0
        %447 = vmatpush.msra.mxu0 0.0
        %448 = vmatpush.msra.mxu0 0.0
        %449 = vmatpush.msra.mxu0 0.0
        %450 = vmatpush.msra.mxu0 0.0
        %451 = vmatpush.msra.mxu0 0.0
        %452 = vmatpush.msra.mxu0 0.0
        %453 = vmatpush.msra.mxu0 %v370
        %454 = vmatpush.msra.mxu0 %v368
        %455 = vmatpush.msra.mxu0 %v366
        %456 = vmatpush.msra.mxu0 %v364
        %457 = vmatmul.f32.gmra.mxu0 %v401
        %v458 = vpop.f32.mrf.mxu0
        %v459 = vadd.f32 %v382, %v458
        %460 = vmatmul.f32.gmra.mxu0 %v404
        %v461 = vpop.f32.mrf.mxu0
        %v462 = vadd.f32 %v387, %v461
        %463 = vmatmul.f32.gmra.mxu0 %v407
        %v464 = vpop.f32.mrf.mxu0
        %v465 = vadd.f32 %v392, %v464
        %466 = vmatmul.f32.gmra.mxu0 %v410
        %v467 = vpop.f32.mrf.mxu0
        %v468 = vadd.f32 %v397, %v467
        %469 = vdwg.mxu0
        %v470 = vmax.f32 %v430, 0.0
        %v471 = vmax.f32 %v459, 0.0
        %v472 = vmax.f32 %v433, 0.0
        %v473 = vmax.f32 %v462, 0.0
        %v474 = vmax.f32 %v436, 0.0
        %v475 = vmax.f32 %v465, 0.0
        %v476 = vmax.f32 %v439, 0.0
        %v477 = vmax.f32 %v468, 0.0
        %v478 = vld [vmem:[#allocation7 + $0x30] sm:$0xff]
        %v479 = vld [vmem:[#allocation7 + $0x80] sm:$0xff]
        %v480 = vld [vmem:[#allocation7 + $0xd0] sm:$0xff]
        %v481 = vld [vmem:[#allocation7 + $0x120] sm:$0xff]
        %v482 = vld [vmem:[#allocation7 + $0x170] sm:$0xff]
        %v483 = vld [vmem:[#allocation7 + $0x1c0] sm:$0xff]
        %v484 = vld [vmem:[#allocation7 + $0x210] sm:$0xff]
        %v485 = vld [vmem:[#allocation7 + $0x260] sm:$0xff]
        %v486 = vld [vmem:[#allocation7 + $0x38] sm:$0xff]
        %v487 = vld [vmem:[#allocation7 + $0x88] sm:$0xff]
        %v488 = vld [vmem:[#allocation7 + $0xd8] sm:$0xff]
        %v489 = vld [vmem:[#allocation7 + $0x128] sm:$0xff]
        %v490 = vld [vmem:[#allocation7 + $0x178] sm:$0xff]
        %v491 = vld [vmem:[#allocation7 + $0x1c8] sm:$0xff]
        %v492 = vld [vmem:[#allocation7 + $0x218] sm:$0xff]
        %v493 = vld [vmem:[#allocation7 + $0x268] sm:$0xff]
        %495 = vset.pattern.permute.xlu0 0
        %496 = vperm.xlu0 %495, %v486
        %v497 = vpop.permute.xlu0 %496
        %500 = vset.pattern.permute.xlu0 0
        %501 = vperm.xlu0 %500, %v487
        %v502 = vpop.permute.xlu0 %501
        %505 = vset.pattern.permute.xlu0 0
        %506 = vperm.xlu0 %505, %v488
        %v507 = vpop.permute.xlu0 %506
        %510 = vset.pattern.permute.xlu0 0
        %511 = vperm.xlu0 %510, %v489
        %v512 = vpop.permute.xlu0 %511
        %515 = vset.pattern.permute.xlu0 0
        %516 = vperm.xlu0 %515, %v490
        %v517 = vpop.permute.xlu0 %516
        %520 = vset.pattern.permute.xlu0 0
        %521 = vperm.xlu0 %520, %v491
        %v522 = vpop.permute.xlu0 %521
        %525 = vset.pattern.permute.xlu0 0
        %526 = vperm.xlu0 %525, %v492
        %v527 = vpop.permute.xlu0 %526
        %530 = vset.pattern.permute.xlu0 0
        %531 = vperm.xlu0 %530, %v493
        %v532 = vpop.permute.xlu0 %531
        %v535 = vsel %vm399, %v478, 0
        %v538 = vsel %vm399, %v479, 0
        %v541 = vsel %vm399, %v480, 0
        %v544 = vsel %vm399, %v481, 0
        %v547 = vsel %vm399, %v482, 0
        %v550 = vsel %vm399, %v483, 0
        %v553 = vsel %vm399, %v484, 0
        %v556 = vsel %vm399, %v485, 0
        %558 = vmatpush.msra.mxu0 0.0
        %559 = vmatpush.msra.mxu0 0.0
        %560 = vmatpush.msra.mxu0 0.0
        %561 = vmatpush.msra.mxu0 0.0
        %562 = vmatpush.msra.mxu0 0.0
        %563 = vmatpush.msra.mxu0 0.0
        %564 = vmatpush.msra.mxu0 0.0
        %565 = vmatpush.msra.mxu0 0.0
        %566 = vmatpush.msra.mxu0 0.0
        %567 = vmatpush.msra.mxu0 0.0
        %568 = vmatpush.msra.mxu0 0.0
        %569 = vmatpush.msra.mxu0 0.0
        %570 = vmatpush.msra.mxu0 %v476
        %571 = vmatpush.msra.mxu0 %v474
        %572 = vmatpush.msra.mxu0 %v472
        %573 = vmatpush.msra.mxu0 %v470
        %574 = vmatmul.f32.gmra.mxu0 %v535
        %v575 = vpop.f32.mrf.mxu0
        %v576 = vadd.f32 %v497, %v575
        %577 = vmatmul.f32.gmra.mxu0 %v538
        %v578 = vpop.f32.mrf.mxu0
        %v579 = vadd.f32 %v502, %v578
        %580 = vmatmul.f32.gmra.mxu0 %v541
        %v581 = vpop.f32.mrf.mxu0
        %v582 = vadd.f32 %v507, %v581
        %583 = vmatmul.f32.gmra.mxu0 %v544
        %v584 = vpop.f32.mrf.mxu0
        %v585 = vadd.f32 %v512, %v584
        %586 = vmatmul.f32.gmra.mxu0 %v547
        %v587 = vpop.f32.mrf.mxu0
        %v588 = vadd.f32 %v517, %v587
        %589 = vmatmul.f32.gmra.mxu0 %v550
        %v590 = vpop.f32.mrf.mxu0
        %v591 = vadd.f32 %v522, %v590
        %592 = vmatmul.f32.gmra.mxu0 %v553
        %v593 = vpop.f32.mrf.mxu0
        %v594 = vadd.f32 %v527, %v593
        %595 = vmatmul.f32.gmra.mxu0 %v556
        %v596 = vpop.f32.mrf.mxu0
        %v597 = vadd.f32 %v532, %v596
        %598 = vdwg.mxu0
        %599 = vmatpush.msra.mxu0 0.0
        %600 = vmatpush.msra.mxu0 0.0
        %601 = vmatpush.msra.mxu0 0.0
        %602 = vmatpush.msra.mxu0 0.0
        %603 = vmatpush.msra.mxu0 0.0
        %604 = vmatpush.msra.mxu0 0.0
        %605 = vmatpush.msra.mxu0 0.0
        %606 = vmatpush.msra.mxu0 0.0
        %607 = vmatpush.msra.mxu0 0.0
        %608 = vmatpush.msra.mxu0 0.0
        %609 = vmatpush.msra.mxu0 0.0
        %610 = vmatpush.msra.mxu0 0.0
        %611 = vmatpush.msra.mxu0 %v477
        %612 = vmatpush.msra.mxu0 %v475
        %613 = vmatpush.msra.mxu0 %v473
        %614 = vmatpush.msra.mxu0 %v471
        %615 = vmatmul.f32.gmra.mxu0 %v535
        %v616 = vpop.f32.mrf.mxu0
        %v617 = vadd.f32 %v497, %v616
        %618 = vmatmul.f32.gmra.mxu0 %v538
        %v619 = vpop.f32.mrf.mxu0
        %v620 = vadd.f32 %v502, %v619
        %621 = vmatmul.f32.gmra.mxu0 %v541
        %v622 = vpop.f32.mrf.mxu0
        %v623 = vadd.f32 %v507, %v622
        %624 = vmatmul.f32.gmra.mxu0 %v544
        %v625 = vpop.f32.mrf.mxu0
        %v626 = vadd.f32 %v512, %v625
        %627 = vmatmul.f32.gmra.mxu0 %v547
        %v628 = vpop.f32.mrf.mxu0
        %v629 = vadd.f32 %v517, %v628
        %630 = vmatmul.f32.gmra.mxu0 %v550
        %v631 = vpop.f32.mrf.mxu0
        %v632 = vadd.f32 %v522, %v631
        %633 = vmatmul.f32.gmra.mxu0 %v553
        %v634 = vpop.f32.mrf.mxu0
        %v635 = vadd.f32 %v527, %v634
        %636 = vmatmul.f32.gmra.mxu0 %v556
        %v637 = vpop.f32.mrf.mxu0
        %v638 = vadd.f32 %v532, %v637
        %639 = vdwg.mxu0
        %v640 = vmax.f32 %v576, 0.0
        %v641 = vmax.f32 %v617, 0.0
        %v642 = vmax.f32 %v579, 0.0
        %v643 = vmax.f32 %v620, 0.0
        %v644 = vmax.f32 %v582, 0.0
        %v645 = vmax.f32 %v623, 0.0
        %v646 = vmax.f32 %v585, 0.0
        %v647 = vmax.f32 %v626, 0.0
        %v648 = vmax.f32 %v588, 0.0
        %v649 = vmax.f32 %v629, 0.0
        %v650 = vmax.f32 %v591, 0.0
        %v651 = vmax.f32 %v632, 0.0
        %v652 = vmax.f32 %v594, 0.0
        %v653 = vmax.f32 %v635, 0.0
        %v654 = vmax.f32 %v597, 0.0
        %v655 = vmax.f32 %v638, 0.0
        %v656 = vld [vmem:[#allocation7 + $0x40] sm:$0xff]
        %v657 = vld [vmem:[#allocation7 + $0x48] sm:$0xff]
        %659 = vset.pattern.permute.xlu0 0
        %660 = vperm.xlu0 %659, %v657
        %v661 = vpop.permute.xlu0 %660
        %vm663 = vcmask 523264
        %v665 = vsel %vm663, %v656, 0
        %667 = vmatpush.msra.mxu0 0.0
        %668 = vmatpush.msra.mxu0 0.0
        %669 = vmatpush.msra.mxu0 0.0
        %670 = vmatpush.msra.mxu0 0.0
        %671 = vmatpush.msra.mxu0 0.0
        %672 = vmatpush.msra.mxu0 0.0
        %673 = vmatpush.msra.mxu0 0.0
        %674 = vmatpush.msra.mxu0 0.0
        %675 = vmatpush.msra.mxu0 %v654
        %676 = vmatpush.msra.mxu0 %v652
        %677 = vmatpush.msra.mxu0 %v650
        %678 = vmatpush.msra.mxu0 %v648
        %679 = vmatpush.msra.mxu0 %v646
        %680 = vmatpush.msra.mxu0 %v644
        %681 = vmatpush.msra.mxu0 %v642
        %682 = vmatpush.msra.mxu0 %v640
        %683 = vmatmul.f32.gmra.mxu0 %v665
        %v684 = vpop.f32.mrf.mxu0
        %v685 = vadd.f32 %v661, %v684
        %686 = vdwg.mxu0
        %687 = vmatpush.msra.mxu0 0.0
        %688 = vmatpush.msra.mxu0 0.0
        %689 = vmatpush.msra.mxu0 0.0
        %690 = vmatpush.msra.mxu0 0.0
        %691 = vmatpush.msra.mxu0 0.0
        %692 = vmatpush.msra.mxu0 0.0
        %693 = vmatpush.msra.mxu0 0.0
        %694 = vmatpush.msra.mxu0 0.0
        %695 = vmatpush.msra.mxu0 %v655
        %696 = vmatpush.msra.mxu0 %v653
        %697 = vmatpush.msra.mxu0 %v651
        %698 = vmatpush.msra.mxu0 %v649
        %699 = vmatpush.msra.mxu0 %v647
        %700 = vmatpush.msra.mxu0 %v645
        %701 = vmatpush.msra.mxu0 %v643
        %702 = vmatpush.msra.mxu0 %v641
        %703 = vmatmul.f32.gmra.mxu0 %v665
        %v704 = vpop.f32.mrf.mxu0
        %v705 = vadd.f32 %v661, %v704
        %706 = vdwg.mxu0
        %v707 = vmax.f32 %v685, 0.0
        %v708 = vmax.f32 %v705, 0.0
        %709 = vst [vmem:[%s180] sm:$0xff] %v707
        %710 = vst [vmem:[%s180 + $0x8] sm:$0xff] %v708
        %s711 = sand.u32 %s77, 1
        %s712 = scalar_lea.sflag [#allocation6], %s711
        %s713 = sand.u32 %s77, 1
        %s714 = smul.addr %s713, 16
        %s715 = scalar_lea.vmem [#allocation9], %s714
        // Predicated region
        $region37: #{tpu_custom_call.1} parent=27 // pred_check
          %p716 = pneg %p87
        $region38: #{tpu_custom_call.1} parent=27 // pred_check_branch
          %718 = sbr.rel (%p716) target = $region40
        $region39: #{tpu_custom_call.1} parent=27 // pred_region
          %s719 = smul.u32 2, %s22
          %721 = vsyncadd %s712, 0
          %s722 = smul.addr %s719, 8
          %s723 = scalar_lea.hbm %s3, %s722
          %s725 = sshll.u32 %s715, 4
          %s726 = int_to_ptr.vmem [resolvable:$true] %s725
          %s727 = sshll.u32 %s723, 4
          %s728 = int_to_ptr.hbm [resolvable:$true] %s727
          %730 = dma.vmem_to_hbm [thread:$0]  %s726, 256, %s728, %s712
        $region40: #{tpu_custom_call.1} parent=27 // pred_fallthru
          _
      $region28: #{tpu_custom_call.1} parent=5 // pred_fallthru
        _
      %p731 = scmp.le.s32.totalorder 2, %s17
      // Predicated region
      $region41: #{tpu_custom_call.1} parent=5 // pred_check
        %p732 = pneg %p731
      $region42: #{tpu_custom_call.1} parent=5 // pred_check_branch
        %734 = sbr.rel (%p732) target = $region44
      $region43: #{tpu_custom_call.1} parent=5 // pred_region
        %s735 = ssub.s32 %s17, 2
        // Predicated region
        $region45: #{tpu_custom_call.1} parent=43 // pred_check
          %p736 = pneg %p93
        $region46: #{tpu_custom_call.1} parent=43 // pred_check_branch
          %738 = sbr.rel (%p736) target = $region48
        $region47: #{tpu_custom_call.1} parent=43 // pred_region
          %s739 = sand.u32 %s78, 1
          %s740 = scalar_lea.sflag [#allocation6], %s739
          %s741 = sand.u32 %s78, 1
          %s742 = smul.addr %s741, 16
          %s743 = scalar_lea.vmem [#allocation9], %s742
          %745 = dma.done %s740, 256
        $region48: #{tpu_custom_call.1} parent=43 // pred_fallthru
          _
      $region44: #{tpu_custom_call.1} parent=5 // pred_fallthru
        _
    $region6: #{tpu_custom_call.1} parent=1 // loop_footer
      %s21 = sadd.s32 1, %s17
    $region7: #{tpu_custom_call.1} parent=1 // loop_footer_branch
      %16 = sbr.rel target = $region3
    $region8: #{tpu_custom_call.1} parent=1 // loop_exit
      _
    %746 = vsyncpa [#allocation5], 1
    %s747 = scalar_lea.sflag [#allocation5], 1
    %748 = vsyncpa %s747, 1
    %749 = vsyncpa [#allocation8], 1
    %750 = vsyncpa [#allocation6], 1
    %s751 = scalar_lea.sflag [#allocation6], 1
    %752 = vsyncpa %s751, 1

</llo_original>
